<compile_context>
chip_gen: v7x
topology: tpu7x:2x2x1
jax: 0.10.0
libtpu: 0.0.40
codegen_flags: <defaults>
</compile_context>

<pallas_src>
import functools

import jax
import jax.numpy as jnp
from jax.experimental import pallas as pl
from jax.experimental.pallas import tpu as pltpu


def _basic_conv_kernel(x_ref, w_ref, scale_ref, bias_ref, o_ref, xpad_ref, *,
                       H, W, Cin, H_out, KH, padding, dilation, relu):
    """One batch element: block-Toeplitz conv + folded inference-BN + ReLU.

    x_ref:     (H, W*Cin)             bf16 lane-folded input (channels-last)
    w_ref:     (KH, Wp*Cin, W_out*Cout)  bf16 block-Toeplitz weight
    scale_ref: (1, W_out*Cout)        f32 folded BN scale (tiled over W_out)
    bias_ref:  (1, W_out*Cout)        f32 folded BN bias  (tiled over W_out)
    o_ref:     (H_out, W_out*Cout)    f32 lane-dense output
    xpad_ref:  (Hp, Wp*Cin)           f32 scratch: zero-padded input rows
    """
    wc_out = o_ref.shape[-1]
    wc_pad = xpad_ref.shape[-1]

    if padding > 0:
        p = padding
        pc = p * Cin
        wc = W * Cin
        # Border-only zeroing; interior written exactly once by the copy below.
        xpad_ref[:p, :] = jnp.zeros((p, wc_pad), jnp.float32)
        xpad_ref[p + H:, :] = jnp.zeros((p, wc_pad), jnp.float32)
        xpad_ref[p:p + H, :pc] = jnp.zeros((H, pc), jnp.float32)
        xpad_ref[p:p + H, pc + wc:] = jnp.zeros((H, pc), jnp.float32)
        xpad_ref[p:p + H, pc:pc + wc] = x_ref[...].astype(jnp.float32)
        src = xpad_ref
    else:
        src = x_ref  # no padding -> read the input rows directly, no copy

    # KH accumulated MXU matmuls, each (H_out, Wp*Cin) x (Wp*Cin, W_out*Cout):
    # K = Wp*Cin per tap, lane-dense W_out*Cout output -> no im2col concat and
    # no post-dot relayout.  bf16 MXU inputs, f32 accumulation.
    acc = jnp.zeros((H_out, wc_out), jnp.float32)
    for kh in range(KH):
        r0 = kh * dilation
        lhs = src[r0:r0 + H_out, :].astype(jnp.bfloat16)
        acc = acc + jnp.dot(lhs, w_ref[kh], preferred_element_type=jnp.float32)

    # Fused inference-BN + ReLU epilogue: plain elementwise f32 VPU ops on a
    # lane-dense layout -> unmasked stores.
    y = acc * scale_ref[...] + bias_ref[...]
    if relu:
        y = jnp.maximum(y, 0.0)
    o_ref[...] = y.astype(o_ref.dtype)


def basic_conv(x_nchw, weight_oihw, gamma, beta, running_mean, running_var,
               *, stride=1, padding=0, dilation=1, groups=1,
               relu=True, bn=True, eps=1e-5):
    """Pallas implementation of BasicConv.forward for NCHW inputs."""
    assert stride == 1 and groups == 1, "only stride=1, groups=1 implemented"
    N, Cin, H, W = x_nchw.shape
    Cout, Cin_w, KH, KW = weight_oihw.shape
    assert Cin_w == Cin

    H_out = (H + 2 * padding - dilation * (KH - 1) - 1) // stride + 1
    W_out = (W + 2 * padding - dilation * (KW - 1) - 1) // stride + 1
    Hp, Wp = H + 2 * padding, W + 2 * padding
    wc_in = Wp * Cin        # contraction length per kernel-row tap
    wc_out = W_out * Cout   # lane-dense output minor dim (128 in the test)

    # ---- one-time glue (plain JAX; would live at module init in a real net) ----
    # Lane-folded channels-last activations, bf16 for the MXU.
    x_fold = jnp.transpose(x_nchw, (0, 2, 3, 1)).reshape(N, H, W * Cin)
    x_fold = x_fold.astype(jnp.bfloat16)

    # Block-Toeplitz (width-unrolled) weight:
    #   w_toe[kh, wp*Cin+ci, ow*Cout+co] = w[co,ci,kh,kw] iff wp == ow*stride + kw*dilation
    w_hwio = jnp.transpose(weight_oihw, (2, 3, 1, 0)).astype(jnp.float32)  # (KH,KW,Cin,Cout)
    wp_idx = (jnp.arange(W_out)[None, :] * stride
              + jnp.arange(KW)[:, None] * dilation)                        # (KW, W_out)
    onehot = (jnp.arange(Wp)[None, None, :] == wp_idx[:, :, None]).astype(jnp.float32)
    w_toe = jnp.einsum('kop,hkic->hpioc', onehot, w_hwio)                  # (KH,Wp,Cin,W_out,Cout)
    w_toe = w_toe.reshape(KH, wc_in, wc_out).astype(jnp.bfloat16)

    if bn:
        scale = (gamma / jnp.sqrt(running_var + eps)).astype(jnp.float32)
        bias = (beta - running_mean * scale).astype(jnp.float32)
    else:
        scale = jnp.ones((Cout,), jnp.float32)
        bias = jnp.zeros((Cout,), jnp.float32)
    # Tile per-channel scale/bias across W_out so the epilogue broadcasts over
    # the lane-dense (W_out*Cout) output minor dim.
    scale_t = jnp.tile(scale, W_out).reshape(1, wc_out)
    bias_t = jnp.tile(bias, W_out).reshape(1, wc_out)

    kernel = functools.partial(
        _basic_conv_kernel,
        H=H, W=W, Cin=Cin, H_out=H_out, KH=KH,
        padding=padding, dilation=dilation, relu=relu)

    flops = 2 * N * H_out * W_out * Cout * KH * KW * Cin
    bytes_accessed = (x_fold.size * 2 + w_toe.size * 2
                      + (scale_t.size + bias_t.size) * 4
                      + N * H_out * wc_out * 4)

    out_flat = pl.pallas_call(
        kernel,
        out_shape=jax.ShapeDtypeStruct((N, H_out, wc_out), jnp.float32),
        grid=(N,),
        in_specs=[
            pl.BlockSpec((None, H, W * Cin), lambda n: (n, 0, 0)),     # x (bf16)
            pl.BlockSpec((KH, wc_in, wc_out), lambda n: (0, 0, 0)),    # Toeplitz weight
            pl.BlockSpec((1, wc_out), lambda n: (0, 0)),               # BN scale
            pl.BlockSpec((1, wc_out), lambda n: (0, 0)),               # BN bias
        ],
        out_specs=pl.BlockSpec((None, H_out, wc_out), lambda n: (n, 0, 0)),
        scratch_shapes=[pltpu.VMEM((Hp, wc_in), jnp.float32)],
        compiler_params=pltpu.CompilerParams(
            dimension_semantics=("parallel",),
            vmem_limit_bytes=32 * 1024 * 1024),
        cost_estimate=pl.CostEstimate(flops=flops, transcendentals=0,
                                      bytes_accessed=int(bytes_accessed)),
    )(x_fold, w_toe, scale_t, bias_t)

    out_nhwc = out_flat.reshape(N, H_out, W_out, Cout)
    return jnp.transpose(out_nhwc, (0, 3, 1, 2))  # back to NCHW (PyTorch API)


def _reference(x_nchw, weight_oihw, gamma, beta, running_mean, running_var,
               *, padding, dilation, relu, bn, eps=1e-5):
    y = jax.lax.conv_general_dilated(
        x_nchw.astype(jnp.float32), weight_oihw.astype(jnp.float32),
        window_strides=(1, 1), padding=[(padding, padding)] * 2,
        rhs_dilation=(dilation, dilation),
        dimension_numbers=('NCHW', 'OIHW', 'NCHW'))
    if bn:
        s = (gamma / jnp.sqrt(running_var + eps)).reshape(1, -1, 1, 1)
        b = (beta - running_mean * gamma / jnp.sqrt(running_var + eps)).reshape(1, -1, 1, 1)
        y = y * s + b
    if relu:
        y = jnp.maximum(y, 0.0)
    return y


if __name__ == "__main__":
    # Module config: BasicConv(in_planes=4, out_planes=8, kernel_size=3,
    #                          stride=1, padding=1, relu=True, bn=True, bias=False)
    in_planes, out_planes, ksize, padding, dilation = 4, 8, 3, 1, 1

    key = jax.random.PRNGKey(0)
    kx, kw, kg, kb, km, kv = jax.random.split(key, 6)

    x = jax.random.normal(kx, (2, in_planes, 16, 16), dtype=jnp.float32)
    weight = jax.random.normal(kw, (out_planes, in_planes, ksize, ksize),
                               dtype=jnp.float32) * 0.1
    gamma = 1.0 + 0.1 * jax.random.normal(kg, (out_planes,), dtype=jnp.float32)
    beta = 0.1 * jax.random.normal(kb, (out_planes,), dtype=jnp.float32)
    running_mean = 0.05 * jax.random.normal(km, (out_planes,), dtype=jnp.float32)
    running_var = 1.0 + 0.1 * jax.random.uniform(kv, (out_planes,), dtype=jnp.float32)

    out = basic_conv(x, weight, gamma, beta, running_mean, running_var,
                     stride=1, padding=padding, dilation=dilation,
                     relu=True, bn=True)
    out = jax.block_until_ready(out)

    ref = _reference(x, weight, gamma, beta, running_mean, running_var,
                     padding=padding, dilation=dilation, relu=True, bn=True)
    assert out.shape == (2, out_planes, 16, 16), out.shape
    # bf16 MXU inputs (f32 accumulation) -> loosened tolerance vs f32 reference.
    assert jnp.allclose(out, ref, atol=5e-2, rtol=5e-2), "mismatch vs reference"

    print("KERNEL_OK")
</pallas_src>

<mosaic_0001>
module attributes {stable_mosaic.version = 11 : i64} {
  func.func @_basic_conv_kernel(%arg0: i32, %arg1: memref<1x16x64xbf16, #tpu.memory_space<vmem>>, %arg2: memref<3x72x128xbf16, #tpu.memory_space<vmem>>, %arg3: memref<1x128xf32, #tpu.memory_space<vmem>>, %arg4: memref<1x128xf32, #tpu.memory_space<vmem>>, %arg5: memref<1x16x128xf32, #tpu.memory_space<vmem>>, %arg6: memref<18x72xf32, #tpu.memory_space<vmem>>) attributes {dimension_semantics = [#tpu.dimension_semantics<parallel>], iteration_bounds = array<i64: 2>, scalar_prefetch = 0 : i64, scratch_operands = 1 : i64, tpu.core_type = #tpu.core_type<tc>, window_params = [{transform_indices = @transform_0, window_bounds = array<i64: 1, 16, 64>}, {pipeline_mode = #tpu.pipeline_mode<synchronous>, transform_indices = @transform_1, window_bounds = array<i64: 3, 72, 128>}, {pipeline_mode = #tpu.pipeline_mode<synchronous>, transform_indices = @transform_2, window_bounds = array<i64: 1, 128>}, {pipeline_mode = #tpu.pipeline_mode<synchronous>, transform_indices = @transform_3, window_bounds = array<i64: 1, 128>}, {transform_indices = @transform_4, window_bounds = array<i64: 1, 16, 128>}]} {
    %cst = arith.constant 0.000000e+00 : f32
    %0 = vector.broadcast %cst : f32 to vector<1x72xf32>
    %c0 = arith.constant 0 : index
    %c0_0 = arith.constant 0 : index
    %1 = vector.load %arg6[%c0, %c0_0] : memref<18x72xf32, #tpu.memory_space<vmem>>, vector<1x72xf32>
    tpu.vector_store %arg6[%c0, %c0_0], %0 {strides = array<i32>} : memref<18x72xf32, #tpu.memory_space<vmem>>, vector<1x72xf32>,
    %cst_1 = arith.constant 0.000000e+00 : f32
    %2 = vector.broadcast %cst_1 : f32 to vector<1x72xf32>
    %c17 = arith.constant 17 : index
    %c0_2 = arith.constant 0 : index
    %3 = vector.load %arg6[%c17, %c0_2] : memref<18x72xf32, #tpu.memory_space<vmem>>, vector<1x72xf32>
    tpu.vector_store %arg6[%c17, %c0_2], %2 {strides = array<i32>} : memref<18x72xf32, #tpu.memory_space<vmem>>, vector<1x72xf32>,
    %cst_3 = arith.constant 0.000000e+00 : f32
    %4 = vector.broadcast %cst_3 : f32 to vector<16x4xf32>
    %c1 = arith.constant 1 : index
    %c0_4 = arith.constant 0 : index
    %5 = vector.load %arg6[%c1, %c0_4] : memref<18x72xf32, #tpu.memory_space<vmem>>, vector<16x4xf32>
    tpu.vector_store %arg6[%c1, %c0_4], %4 {strides = array<i32>} : memref<18x72xf32, #tpu.memory_space<vmem>>, vector<16x4xf32>,
    %cst_5 = arith.constant 0.000000e+00 : f32
    %6 = vector.broadcast %cst_5 : f32 to vector<16x4xf32>
    %c1_6 = arith.constant 1 : index
    %c68 = arith.constant 68 : index
    %7 = vector.load %arg6[%c1_6, %c68] : memref<18x72xf32, #tpu.memory_space<vmem>>, vector<16x4xf32>
    tpu.vector_store %arg6[%c1_6, %c68], %6 {strides = array<i32>} : memref<18x72xf32, #tpu.memory_space<vmem>>, vector<16x4xf32>,
    %c0_7 = arith.constant 0 : index
    %c0_8 = arith.constant 0 : index
    %c0_9 = arith.constant 0 : index
    %8 = vector.load %arg1[%c0_7, %c0_8, %c0_9] : memref<1x16x64xbf16, #tpu.memory_space<vmem>>, vector<1x16x64xbf16>
    %9 = vector.shape_cast %8 : vector<1x16x64xbf16> to vector<16x64xbf16>
    %10 = arith.extf %9 : vector<16x64xbf16> to vector<16x64xf32>
    %c1_10 = arith.constant 1 : index
    %c4 = arith.constant 4 : index
    %11 = vector.load %arg6[%c1_10, %c4] : memref<18x72xf32, #tpu.memory_space<vmem>>, vector<16x64xf32>
    tpu.vector_store %arg6[%c1_10, %c4], %10 {strides = array<i32>} : memref<18x72xf32, #tpu.memory_space<vmem>>, vector<16x64xf32>,
    %cst_11 = arith.constant 0.000000e+00 : f32
    %12 = vector.broadcast %cst_11 : f32 to vector<16x128xf32>
    %c0_12 = arith.constant 0 : index
    %c0_13 = arith.constant 0 : index
    %13 = vector.load %arg6[%c0_12, %c0_13] : memref<18x72xf32, #tpu.memory_space<vmem>>, vector<16x72xf32>
    %14 = arith.truncf %13 : vector<16x72xf32> to vector<16x72xbf16>
    %c0_14 = arith.constant 0 : index
    %c0_15 = arith.constant 0 : index
    %c0_16 = arith.constant 0 : index
    %15 = vector.load %arg2[%c0_14, %c0_15, %c0_16] : memref<3x72x128xbf16, #tpu.memory_space<vmem>>, vector<1x72x128xbf16>
    %16 = vector.shape_cast %15 : vector<1x72x128xbf16> to vector<72x128xbf16>
    %cst_17 = arith.constant dense<0.000000e+00> : vector<16x128xf32>
    %17 = tpu.matmul %14, %16, %cst_17 {dimension_numbers = #tpu.dot_dimension_numbers<[1], [0], [0], [1], [0, 0, 1, 1], [], []>} : vector<16x72xbf16>, vector<72x128xbf16>, vector<16x128xf32> -> vector<16x128xf32>
    %18 = arith.addf %12, %17 : vector<16x128xf32>
    %c1_18 = arith.constant 1 : index
    %c0_19 = arith.constant 0 : index
    %19 = vector.load %arg6[%c1_18, %c0_19] : memref<18x72xf32, #tpu.memory_space<vmem>>, vector<16x72xf32>
    %20 = arith.truncf %19 : vector<16x72xf32> to vector<16x72xbf16>
    %c1_20 = arith.constant 1 : index
    %c0_21 = arith.constant 0 : index
    %c0_22 = arith.constant 0 : index
    %21 = vector.load %arg2[%c1_20, %c0_21, %c0_22] : memref<3x72x128xbf16, #tpu.memory_space<vmem>>, vector<1x72x128xbf16>
    %22 = vector.shape_cast %21 : vector<1x72x128xbf16> to vector<72x128xbf16>
    %cst_23 = arith.constant dense<0.000000e+00> : vector<16x128xf32>
    %23 = tpu.matmul %20, %22, %cst_23 {dimension_numbers = #tpu.dot_dimension_numbers<[1], [0], [0], [1], [0, 0, 1, 1], [], []>} : vector<16x72xbf16>, vector<72x128xbf16>, vector<16x128xf32> -> vector<16x128xf32>
    %24 = arith.addf %18, %23 : vector<16x128xf32>
    %c2 = arith.constant 2 : index
    %c0_24 = arith.constant 0 : index
    %25 = vector.load %arg6[%c2, %c0_24] : memref<18x72xf32, #tpu.memory_space<vmem>>, vector<16x72xf32>
    %26 = arith.truncf %25 : vector<16x72xf32> to vector<16x72xbf16>
    %c2_25 = arith.constant 2 : index
    %c0_26 = arith.constant 0 : index
    %c0_27 = arith.constant 0 : index
    %27 = vector.load %arg2[%c2_25, %c0_26, %c0_27] : memref<3x72x128xbf16, #tpu.memory_space<vmem>>, vector<1x72x128xbf16>
    %28 = vector.shape_cast %27 : vector<1x72x128xbf16> to vector<72x128xbf16>
    %cst_28 = arith.constant dense<0.000000e+00> : vector<16x128xf32>
    %29 = tpu.matmul %26, %28, %cst_28 {dimension_numbers = #tpu.dot_dimension_numbers<[1], [0], [0], [1], [0, 0, 1, 1], [], []>} : vector<16x72xbf16>, vector<72x128xbf16>, vector<16x128xf32> -> vector<16x128xf32>
    %30 = arith.addf %24, %29 : vector<16x128xf32>
    %c0_29 = arith.constant 0 : index
    %c0_30 = arith.constant 0 : index
    %31 = vector.load %arg3[%c0_29, %c0_30] : memref<1x128xf32, #tpu.memory_space<vmem>>, vector<1x128xf32>
    %32 = vector.broadcast %31 : vector<1x128xf32> to vector<16x128xf32>
    %33 = arith.mulf %30, %32 : vector<16x128xf32>
    %c0_31 = arith.constant 0 : index
    %c0_32 = arith.constant 0 : index
    %34 = vector.load %arg4[%c0_31, %c0_32] : memref<1x128xf32, #tpu.memory_space<vmem>>, vector<1x128xf32>
    %35 = vector.broadcast %34 : vector<1x128xf32> to vector<16x128xf32>
    %36 = arith.addf %33, %35 : vector<16x128xf32>
    %cst_33 = arith.constant 0.000000e+00 : f32
    %37 = vector.broadcast %cst_33 : f32 to vector<16x128xf32>
    %38 = arith.maximumf %36, %37 : vector<16x128xf32>
    %c0_34 = arith.constant 0 : index
    %c0_35 = arith.constant 0 : index
    %c0_36 = arith.constant 0 : index
    %39 = vector.load %arg5[%c0_34, %c0_35, %c0_36] : memref<1x16x128xf32, #tpu.memory_space<vmem>>, vector<1x16x128xf32>
    %40 = vector.shape_cast %39 : vector<1x16x128xf32> to vector<16x128xf32>
    %41 = vector.shape_cast %38 : vector<16x128xf32> to vector<1x16x128xf32>
    tpu.vector_store %arg5[%c0_34, %c0_35, %c0_36], %41 {strides = array<i32>} : memref<1x16x128xf32, #tpu.memory_space<vmem>>, vector<1x16x128xf32>,
    return
  }
  func.func @transform_0(%arg0: i32) -> (i32, i32, i32) {
    %c0_i32 = arith.constant 0 : i32
    %c0_i32_0 = arith.constant 0 : i32
    %c0_i32_1 = arith.constant 0 : i32
    return %arg0, %c0_i32, %c0_i32_0 : i32, i32, i32
  }
  func.func @transform_1(%arg0: i32) -> (i32, i32, i32) {
    %c0_i32 = arith.constant 0 : i32
    %c0_i32_0 = arith.constant 0 : i32
    %c0_i32_1 = arith.constant 0 : i32
    %c0_i32_2 = arith.constant 0 : i32
    return %c0_i32, %c0_i32_0, %c0_i32_1 : i32, i32, i32
  }
  func.func @transform_2(%arg0: i32) -> (i32, i32) {
    %c0_i32 = arith.constant 0 : i32
    %c0_i32_0 = arith.constant 0 : i32
    %c0_i32_1 = arith.constant 0 : i32
    return %c0_i32, %c0_i32_0 : i32, i32
  }
  func.func @transform_3(%arg0: i32) -> (i32, i32) {
    %c0_i32 = arith.constant 0 : i32
    %c0_i32_0 = arith.constant 0 : i32
    %c0_i32_1 = arith.constant 0 : i32
    return %c0_i32, %c0_i32_0 : i32, i32
  }
  func.func @transform_4(%arg0: i32) -> (i32, i32, i32) {
    %c0_i32 = arith.constant 0 : i32
    %c0_i32_0 = arith.constant 0 : i32
    %c0_i32_1 = arith.constant 0 : i32
    return %arg0, %c0_i32, %c0_i32_0 : i32, i32, i32
  }
}

</mosaic_0001>

<llo_original>
// kernel: tpu_custom_call.1
$region0: #{tpu_custom_call.1}
  #allocation0 [shape = 'u32[]', space=smem, size = 0x4, offset = 0x4, fixed_abs, tag = 'smem constant byte address 0x4 - core index']
  #allocation1 [shape = 'u32[144,128]{1,0:T(1,128)}', space=vmem, size = 0x12000, scoped, tag = 'internal scratch']
  #allocation2 [shape = 'f32[18,72]{1,0:T(8,128)}', space=vmem, size = 0x3000, scoped, tag = 'scratch operand']
  %s0 = inlined_call_operand.hbm [shape: bf16[2,16,64], index: 0, kind: input, shape index: {}]
  %s1 = inlined_call_operand.hbm [shape: bf16[3,72,128], index: 1, kind: input, shape index: {}]
  %s2 = inlined_call_operand.vmem [shape: f32[1,128], index: 2, kind: input, shape index: {}]
  %s3 = inlined_call_operand.vmem [shape: f32[1,128], index: 3, kind: input, shape index: {}]
  %s4 = inlined_call_operand.hbm [shape: f32[2,16,128], index: 4, kind: output, shape index: {}]
  %s5 = sld [smem:[#allocation0]]
  $region57: #{tpu_custom_call.1} parent=0
    _
  %s7 = ssub.s32 1, %s5
  %s8 = scalar_select 0, %s7, %s5
  $region1: #{tpu_custom_call.1} parent=0
    #allocation3 [shape = 'u8[8192]{0}', space=vmem, size = 0x2000, scoped, tag = 'input window, operand 0']
    #allocation4 [shape = 's32[2]{0}', space=sflag, size = 0x8, scoped, tag = 'scoped memory for tpu_custom_call.1']
    #allocation5 [shape = 's32[2]{0}', space=sflag, size = 0x8, scoped, tag = 'scoped memory for tpu_custom_call.1']
    #allocation6 [shape = 'u8[55296]{0}', space=vmem, size = 0xd800, scoped, tag = 'input window, operand 1, single buffered']
    #allocation7 [shape = 's32[1]{0}', space=sflag, size = 0x4, scoped, tag = 'scoped memory for tpu_custom_call.1']
    #allocation8 [shape = 'u8[16384]{0}', space=vmem, size = 0x4000, scoped, tag = 'output window, operand 0']
    %9 = vsyncpa [#allocation4], 0
    %s10 = scalar_lea.sflag [#allocation4], 1
    %11 = vsyncpa %s10, 0
    %12 = vsyncpa [#allocation7], 0
    %13 = vsyncpa [#allocation5], 0
    %s14 = scalar_lea.sflag [#allocation5], 1
    %15 = vsyncpa %s14, 0
    loop: start=0, step=1, limit=4
    $region2: #{tpu_custom_call.1} parent=1 // loop_pre_header
      _
    $region3: #{tpu_custom_call.1} parent=1 // loop_header
      %s17 = sphi 0, %s21
      %p18 = scmp.ge.s32.totalorder %s17, 4
      %s27 = sphi 0, %s29
      %s30 = sphi 0, %s27
      %s31 = sphi 0, %s30
      %s47 = sphi 0, %s31
      %s51 = sphi 0, %s51
      %s53 = sphi 0, %s51
      %s54 = sphi 0, %s53
      %s68 = sphi 0, %s54
      %s72 = sphi 0, %s72
      %s74 = sphi 0, %s72
      %s75 = sphi 0, %s74
      %s89 = sphi 0, %s75
      %s93 = sphi 0, %s93
      %s95 = sphi 0, %s93
      %s96 = sphi 0, %s95
      %s110 = sphi 0, %s96
      %s116 = sphi 0, %s118
      %s119 = sphi 0, %s116
      %s120 = sphi 0, %s119
      %s136 = sphi 0, %s120
    $region4: #{tpu_custom_call.1} parent=1 // loop_header_branch
      %20 = sbr.rel (%p18) target = $region8
    $region5: #{tpu_custom_call.1} parent=1 // loop_body
      %s22 = ssub.s32 %s17, 1
      %s23 = ssub.s32 %s17, 2
      %s24 = sadd.s32 %s17, 1
      %s25 = ssub.s32 %s17, %s24
      %p26 = scmp.eq.s32.totalorder %s25, 0
      %s28 = sadd.s32 %s27, 1
      %s29 = scalar_select %p26, %s27, %s28
      %p32 = pneg %p26
      %p33 = scmp.eq.s32.totalorder %s17, 1
      %p34 = por %p32, %p33
      %p35 = scmp.ne.s32.totalorder %s27, %s30
      %p36 = scmp.eq.s32.totalorder %s17, 0
      %p37 = por %p35, %p36
      %p38 = scmp.ne.s32.totalorder %s27, %s30
      %p39 = scmp.eq.s32.totalorder %s22, 1
      %p40 = por %p38, %p39
      %p41 = scmp.ne.s32.totalorder %s30, %s31
      %p42 = scmp.eq.s32.totalorder %s22, 0
      %p43 = por %p41, %p42
      %p44 = scmp.ne.s32.totalorder %s30, %s31
      %p45 = scmp.eq.s32.totalorder %s23, 1
      %p46 = por %p44, %p45
      %p48 = scmp.ne.s32.totalorder %s31, %s47
      %p49 = scmp.eq.s32.totalorder %s23, 0
      %p50 = por %p48, %p49
      %s52 = sadd.s32 %s51, 1
      %p55 = scmp.eq.s32.totalorder %s17, 1
      %p56 = scmp.ne.s32.totalorder %s51, %s53
      %p57 = scmp.eq.s32.totalorder %s17, 0
      %p58 = por %p56, %p57
      %p59 = scmp.ne.s32.totalorder %s51, %s53
      %p60 = scmp.eq.s32.totalorder %s22, 1
      %p61 = por %p59, %p60
      %p62 = scmp.ne.s32.totalorder %s53, %s54
      %p63 = scmp.eq.s32.totalorder %s22, 0
      %p64 = por %p62, %p63
      %p65 = scmp.ne.s32.totalorder %s53, %s54
      %p66 = scmp.eq.s32.totalorder %s23, 1
      %p67 = por %p65, %p66
      %p69 = scmp.ne.s32.totalorder %s54, %s68
      %p70 = scmp.eq.s32.totalorder %s23, 0
      %p71 = por %p69, %p70
      %s73 = sadd.s32 %s72, 1
      %p76 = scmp.eq.s32.totalorder %s17, 1
      %p77 = scmp.ne.s32.totalorder %s72, %s74
      %p78 = scmp.eq.s32.totalorder %s17, 0
      %p79 = por %p77, %p78
      %p80 = scmp.ne.s32.totalorder %s72, %s74
      %p81 = scmp.eq.s32.totalorder %s22, 1
      %p82 = por %p80, %p81
      %p83 = scmp.ne.s32.totalorder %s74, %s75
      %p84 = scmp.eq.s32.totalorder %s22, 0
      %p85 = por %p83, %p84
      %p86 = scmp.ne.s32.totalorder %s74, %s75
      %p87 = scmp.eq.s32.totalorder %s23, 1
      %p88 = por %p86, %p87
      %p90 = scmp.ne.s32.totalorder %s75, %s89
      %p91 = scmp.eq.s32.totalorder %s23, 0
      %p92 = por %p90, %p91
      %s94 = sadd.s32 %s93, 1
      %p97 = scmp.eq.s32.totalorder %s17, 1
      %p98 = scmp.ne.s32.totalorder %s93, %s95
      %p99 = scmp.eq.s32.totalorder %s17, 0
      %p100 = por %p98, %p99
      %p101 = scmp.ne.s32.totalorder %s93, %s95
      %p102 = scmp.eq.s32.totalorder %s22, 1
      %p103 = por %p101, %p102
      %p104 = scmp.ne.s32.totalorder %s95, %s96
      %p105 = scmp.eq.s32.totalorder %s22, 0
      %p106 = por %p104, %p105
      %p107 = scmp.ne.s32.totalorder %s95, %s96
      %p108 = scmp.eq.s32.totalorder %s23, 1
      %p109 = por %p107, %p108
      %p111 = scmp.ne.s32.totalorder %s96, %s110
      %p112 = scmp.eq.s32.totalorder %s23, 0
      %p113 = por %p111, %p112
      %s114 = ssub.s32 %s17, %s24
      %p115 = scmp.eq.s32.totalorder %s114, 0
      %s117 = sadd.s32 %s116, 1
      %s118 = scalar_select %p115, %s116, %s117
      %p121 = pneg %p115
      %p122 = scmp.eq.s32.totalorder %s17, 1
      %p123 = por %p121, %p122
      %p124 = scmp.ne.s32.totalorder %s116, %s119
      %p125 = scmp.eq.s32.totalorder %s17, 0
      %p126 = por %p124, %p125
      %p127 = scmp.ne.s32.totalorder %s116, %s119
      %p128 = scmp.eq.s32.totalorder %s22, 1
      %p129 = por %p127, %p128
      %p130 = scmp.ne.s32.totalorder %s119, %s120
      %p131 = scmp.eq.s32.totalorder %s22, 0
      %p132 = por %p130, %p131
      %p133 = scmp.ne.s32.totalorder %s119, %s120
      %p134 = scmp.eq.s32.totalorder %s23, 1
      %p135 = por %p133, %p134
      %p137 = scmp.ne.s32.totalorder %s120, %s136
      %p138 = scmp.eq.s32.totalorder %s23, 0
      %p139 = por %p137, %p138
      %p140 = scmp.le.s32.totalorder 1, %s17
      %p141 = scmp.lt.s32.totalorder %s17, 3
      %p142 = pnand %p140, %p141
      %p143 = pneg %p142
      // Predicated region
      $region9: #{tpu_custom_call.1} parent=5 // pred_check
        _
      $region10: #{tpu_custom_call.1} parent=5 // pred_check_branch
        %145 = sbr.rel (%p142) target = $region12
      $region11: #{tpu_custom_call.1} parent=5 // pred_region
        %s146 = ssub.s32 %s17, 1
        // Predicated region
        $region13: #{tpu_custom_call.1} parent=11 // pred_check
          %p147 = pneg %p64
        $region14: #{tpu_custom_call.1} parent=11 // pred_check_branch
          %149 = sbr.rel (%p147) target = $region16
        $region15: #{tpu_custom_call.1} parent=11 // pred_region
          %s151 = ssub.s32 1728, 1728
          %152 = vsyncadd [#allocation7], %s151
          %s153 = sshll.u32 [#allocation6], 4
          %s154 = int_to_ptr.vmem [resolvable:$true] %s153
          %159 = dma.hbm_to_vmem [thread:$0]  %s1, 1728, %s154, [#allocation7], 64, 64, 4
        $region16: #{tpu_custom_call.1} parent=11 // pred_fallthru
          _
        // Predicated region
        $region17: #{tpu_custom_call.1} parent=11 // pred_check
          %p160 = pneg %p85
        $region18: #{tpu_custom_call.1} parent=11 // pred_check_branch
          %162 = sbr.rel (%p160) target = $region20
        $region19: #{tpu_custom_call.1} parent=11 // pred_region
          _
        $region20: #{tpu_custom_call.1} parent=11 // pred_fallthru
          _
        // Predicated region
        $region21: #{tpu_custom_call.1} parent=11 // pred_check
          %p163 = pneg %p106
        $region22: #{tpu_custom_call.1} parent=11 // pred_check_branch
          %165 = sbr.rel (%p163) target = $region24
        $region23: #{tpu_custom_call.1} parent=11 // pred_region
          _
        $region24: #{tpu_custom_call.1} parent=11 // pred_fallthru
          _
      $region12: #{tpu_custom_call.1} parent=5 // pred_fallthru
        _
      %p166 = scmp.lt.s32.totalorder %s17, 2
      // Predicated region
      $region25: #{tpu_custom_call.1} parent=5 // pred_check
        %p167 = pneg %p166
      $region26: #{tpu_custom_call.1} parent=5 // pred_check_branch
        %169 = sbr.rel (%p167) target = $region28
      $region27: #{tpu_custom_call.1} parent=5 // pred_region
        // Predicated region
        $region29: #{tpu_custom_call.1} parent=27 // pred_check
          %p170 = pneg %p37
        $region30: #{tpu_custom_call.1} parent=27 // pred_check_branch
          %172 = sbr.rel (%p170) target = $region32
        $region31: #{tpu_custom_call.1} parent=27 // pred_region
          %s173 = sand.u32 %s27, 1
          %s174 = scalar_lea.sflag [#allocation4], %s173
          %s175 = sand.u32 %s27, 1
          %s176 = smul.addr %s175, 8
          %s177 = scalar_lea.vmem [#allocation3], %s176
          %s179 = ssub.s32 128, 128
          %180 = vsyncadd %s174, %s179
          %s181 = smul.addr %s17, 2
          %s182 = smul.addr %s181, 64
          %s183 = scalar_lea.hbm %s0, %s182
          %s184 = sshll.u32 %s177, 4
          %s185 = int_to_ptr.vmem [resolvable:$true] %s184
          %190 = dma.hbm_to_vmem [thread:$0]  %s183, 128, %s185, %s174, 64, 64, 4
        $region32: #{tpu_custom_call.1} parent=27 // pred_fallthru
          _
      $region28: #{tpu_custom_call.1} parent=5 // pred_fallthru
        _
      %p191 = scmp.le.s32.totalorder 1, %s17
      %p192 = scmp.lt.s32.totalorder %s17, 3
      %p193 = pnand %p191, %p192
      %p194 = pneg %p193
      // Predicated region
      $region33: #{tpu_custom_call.1} parent=5 // pred_check
        _
      $region34: #{tpu_custom_call.1} parent=5 // pred_check_branch
        %196 = sbr.rel (%p193) target = $region36
      $region35: #{tpu_custom_call.1} parent=5 // pred_region
        %s197 = ssub.s32 %s17, 1
        %s198 = sand.u32 %s30, 1
        %s199 = scalar_lea.sflag [#allocation4], %s198
        %s200 = sand.u32 %s30, 1
        %s201 = smul.addr %s200, 8
        %s202 = scalar_lea.vmem [#allocation3], %s201
        // Predicated region
        $region37: #{tpu_custom_call.1} parent=35 // pred_check
          %p203 = pneg %p43
        $region38: #{tpu_custom_call.1} parent=35 // pred_check_branch
          %205 = sbr.rel (%p203) target = $region40
        $region39: #{tpu_custom_call.1} parent=35 // pred_region
          %206 = dma.done %s199, 128
        $region40: #{tpu_custom_call.1} parent=35 // pred_fallthru
          _
        // Predicated region
        $region41: #{tpu_custom_call.1} parent=35 // pred_check
          %p207 = pneg %p64
        $region42: #{tpu_custom_call.1} parent=35 // pred_check_branch
          %209 = sbr.rel (%p207) target = $region44
        $region43: #{tpu_custom_call.1} parent=35 // pred_region
          %210 = dma.done [#allocation7], 1728
        $region44: #{tpu_custom_call.1} parent=35 // pred_fallthru
          _
        %s211 = sand.u32 %s30, 1
        %s212 = scalar_lea.sflag [#allocation4], %s211
        %s213 = sand.u32 %s30, 1
        %s214 = smul.addr %s213, 8
        %s215 = scalar_lea.vmem [#allocation3], %s214
        %p216 = pneg %p43
        %p217 = pneg %p40
        %p218 = pneg %p64
        %p219 = pneg %p61
        %p220 = pneg %p85
        %p221 = pneg %p82
        %p222 = pneg %p106
        %p223 = pneg %p103
        %p224 = pneg %p132
        %p225 = pneg %p129
        %s226 = sand.u32 %s119, 1
        %s227 = scalar_lea.sflag [#allocation5], %s226
        %s228 = sand.u32 %s119, 1
        %s229 = smul.addr %s228, 16
        %s230 = scalar_lea.vmem [#allocation8], %s229
        %vm232 = vcmask 581632
        %233 = vst.msk [vmem:[#allocation2] sm:$0x1] %vm232, 0.0
        %234 = vst.msk [vmem:[#allocation2 + $0x11] sm:$0x1] %vm232, 0.0
        %vm235 = vcmask 31744
        %236 = vst.msk [vmem:[#allocation2 + $0x1] sm:$0xff] %vm235, 0.0
        %237 = vst.msk [vmem:[#allocation2 + $0x9] sm:$0xff] %vm235, 0.0
        %vm238 = vcmask 589344
        %239 = vst.msk [vmem:[#allocation2 + $0x1] sm:$0xff] %vm238, 0.0
        %240 = vst.msk [vmem:[#allocation2 + $0x9] sm:$0xff] %vm238, 0.0
        %v241 = vld [vmem:[%s202] sm:$0xf]
        %v242 = vld [vmem:[%s202 + $0x4] sm:$0xf]
        %v243 = vunpack.c.l.bf16 %v241
        %v244 = vunpack.c.l.bf16 %v242
        %247 = vrot.lane.b32.xlu0 %v243, 4
        %v248 = vpop.permute.xlu0 %247
        %249 = vrot.lane.b32.xlu0 %v244, 4
        %v250 = vpop.permute.xlu0 %249
        %vm253 = vcmask 556064
        %254 = vst.msk [vmem:[#allocation2 + $0x1] sm:$0xff] %vm253, %v248
        %255 = vst.msk [vmem:[#allocation2 + $0x9] sm:$0xff] %vm253, %v250
        %v256 = vld [vmem:[#allocation2] sm:$0xff]
        %v257 = vld [vmem:[#allocation2 + $0x8] sm:$0xff]
        %v258 = vpack.c.bf16 %v257, %v256
        %v259 = vld [vmem:[#allocation6] sm:$0xf]
        %v260 = vld [vmem:[#allocation6 + $0x4] sm:$0xf]
        %v261 = vld [vmem:[#allocation6 + $0x8] sm:$0xf]
        %v262 = vld [vmem:[#allocation6 + $0xc] sm:$0xf]
        %v263 = vld [vmem:[#allocation6 + $0x10] sm:$0xf]
        %v264 = vld [vmem:[#allocation6 + $0x14] sm:$0xf]
        %v265 = vld [vmem:[#allocation6 + $0x18] sm:$0xf]
        %v266 = vld [vmem:[#allocation6 + $0x1c] sm:$0xf]
        %v267 = vld [vmem:[#allocation6 + $0x20] sm:$0xf]
        %v268 = vld [vmem:[#allocation2 + $0x1] sm:$0xff]
        %v269 = vld [vmem:[#allocation2 + $0x9] sm:$0xff]
        %v270 = vpack.c.bf16 %v269, %v268
        %s271 = scalar_lea.vmem [#allocation6], 36
        %v272 = vld [vmem:[%s271] sm:$0xf]
        %v273 = vld [vmem:[%s271 + $0x4] sm:$0xf]
        %v274 = vld [vmem:[%s271 + $0x8] sm:$0xf]
        %v275 = vld [vmem:[%s271 + $0xc] sm:$0xf]
        %v276 = vld [vmem:[%s271 + $0x10] sm:$0xf]
        %v277 = vld [vmem:[%s271 + $0x14] sm:$0xf]
        %v278 = vld [vmem:[%s271 + $0x18] sm:$0xf]
        %v279 = vld [vmem:[%s271 + $0x1c] sm:$0xf]
        %v280 = vld [vmem:[%s271 + $0x20] sm:$0xf]
        %v290 = vunpack.c.l.b16 %v272
        %v291 = vunpack.c.l.b16 %v273
        %v292 = vunpack.c.l.b16 %v274
        %v293 = vunpack.c.l.b16 %v275
        %v294 = vunpack.c.l.b16 %v276
        %v295 = vunpack.c.l.b16 %v277
        %v296 = vunpack.c.l.b16 %v278
        %v297 = vunpack.c.l.b16 %v279
        %v298 = vunpack.c.l.b16 %v280
        %v299 = vpack.c.b16 %v291, %v290
        %v300 = vpack.c.b16 %v293, %v292
        %v301 = vpack.c.b16 %v295, %v294
        %v302 = vpack.c.b16 %v297, %v296
        %v303 = vpack.c.b16 %v298, %v298
        %vm308 = vcmask 588800
        %v310 = vsel %vm308, %v270, 0
        %vm312 = vcmask 1043456
        %v314 = vsel %vm312, %v303, 0
        %316 = vmatprep.subr.bf16.mxu0 0
        %317 = vmatpush1.bf16.msra.mxu0 %v299
        %318 = vmatprep.subr.bf16.mxu0 0
        %319 = vmatpush1.bf16.msra.mxu0 %v300
        %320 = vmatprep.subr.bf16.mxu0 0
        %321 = vmatpush1.bf16.msra.mxu0 %v301
        %322 = vmatprep.subr.bf16.mxu0 0
        %323 = vmatpush1.bf16.msra.mxu0 %v302
        %324 = vmatprep.subr.bf16.mxu0 0
        %325 = vmatpush1.bf16.msra.mxu0 %v314
        %326 = vmatprep.subr.bf16.mxu0 0
        %327 = vmatpush1.bf16.msra.mxu0 0
        %328 = vmatprep.subr.bf16.mxu0 0
        %329 = vmatpush1.bf16.msra.mxu0 0
        %330 = vmatprep.subr.bf16.mxu0 0
        %331 = vmatpush1.bf16.msra.mxu0 0
        %332 = vmatprep.subr.bf16.mxu0 0
        %333 = vmatpush1.bf16.msra.mxu0 0
        %334 = vmatprep.subr.bf16.mxu0 0
        %335 = vmatpush1.bf16.msra.mxu0 0
        %336 = vmatprep.subr.bf16.mxu0 0
        %337 = vmatpush1.bf16.msra.mxu0 0
        %338 = vmatprep.subr.bf16.mxu0 0
        %339 = vmatpush1.bf16.msra.mxu0 0
        %340 = vmatprep.subr.bf16.mxu0 0
        %341 = vmatpush1.bf16.msra.mxu0 0
        %342 = vmatprep.subr.bf16.mxu0 0
        %343 = vmatpush1.bf16.msra.mxu0 0
        %344 = vmatprep.subr.bf16.mxu0 0
        %345 = vmatpush1.bf16.msra.mxu0 0
        %346 = vmatprep.subr.bf16.mxu0 0
        %347 = vmatpush1.bf16.msra.mxu0 0
        %348 = vmatprep.mubr.bf16.mxu0 0
        %349 = vmatmul.mubr.bf16.gmra.mrb[0].mxu0 %v310
        %v350 = vpop.f32.mrb[0].mxu0
        %v351 = vadd.f32 0.0, %v350
        %v352 = vpop.f32.mrb[0].mxu0
        %v353 = vpop.f32.mrb[0].mxu0
        %v354 = vadd.f32 0.0, %v353
        %v355 = vpop.f32.mrb[0].mxu0
        %356 = vdwg.mxu0
        %v366 = vunpack.c.l.b16 %v259
        %v367 = vunpack.c.l.b16 %v260
        %v368 = vunpack.c.l.b16 %v261
        %v369 = vunpack.c.l.b16 %v262
        %v370 = vunpack.c.l.b16 %v263
        %v371 = vunpack.c.l.b16 %v264
        %v372 = vunpack.c.l.b16 %v265
        %v373 = vunpack.c.l.b16 %v266
        %v374 = vunpack.c.l.b16 %v267
        %v375 = vpack.c.b16 %v367, %v366
        %v376 = vpack.c.b16 %v369, %v368
        %v377 = vpack.c.b16 %v371, %v370
        %v378 = vpack.c.b16 %v373, %v372
        %v379 = vpack.c.b16 %v374, %v374
        %v385 = vsel %vm308, %v258, 0
        %v388 = vsel %vm312, %v379, 0
        %390 = vmatprep.subr.bf16.mxu0 0
        %391 = vmatpush1.bf16.msra.mxu0 %v375
        %392 = vmatprep.subr.bf16.mxu0 0
        %393 = vmatpush1.bf16.msra.mxu0 %v376
        %394 = vmatprep.subr.bf16.mxu0 0
        %395 = vmatpush1.bf16.msra.mxu0 %v377
        %396 = vmatprep.subr.bf16.mxu0 0
        %397 = vmatpush1.bf16.msra.mxu0 %v378
        %398 = vmatprep.subr.bf16.mxu0 0
        %399 = vmatpush1.bf16.msra.mxu0 %v388
        %400 = vmatprep.subr.bf16.mxu0 0
        %401 = vmatpush1.bf16.msra.mxu0 0
        %402 = vmatprep.subr.bf16.mxu0 0
        %403 = vmatpush1.bf16.msra.mxu0 0
        %404 = vmatprep.subr.bf16.mxu0 0
        %405 = vmatpush1.bf16.msra.mxu0 0
        %406 = vmatprep.subr.bf16.mxu0 0
        %407 = vmatpush1.bf16.msra.mxu0 0
        %408 = vmatprep.subr.bf16.mxu0 0
        %409 = vmatpush1.bf16.msra.mxu0 0
        %410 = vmatprep.subr.bf16.mxu0 0
        %411 = vmatpush1.bf16.msra.mxu0 0
        %412 = vmatprep.subr.bf16.mxu0 0
        %413 = vmatpush1.bf16.msra.mxu0 0
        %414 = vmatprep.subr.bf16.mxu0 0
        %415 = vmatpush1.bf16.msra.mxu0 0
        %416 = vmatprep.subr.bf16.mxu0 0
        %417 = vmatpush1.bf16.msra.mxu0 0
        %418 = vmatprep.subr.bf16.mxu0 0
        %419 = vmatpush1.bf16.msra.mxu0 0
        %420 = vmatprep.subr.bf16.mxu0 0
        %421 = vmatpush1.bf16.msra.mxu0 0
        %422 = vmatprep.mubr.bf16.mxu0 0
        %423 = vmatmul.mubr.bf16.gmra.mrb[0].mxu0 %v385
        %v424 = vpop.f32.mrb[0].mxu0
        %v425 = vadd.f32 %v351, %v424
        %v426 = vpop.f32.mrb[0].mxu0
        %v427 = vpop.f32.mrb[0].mxu0
        %v428 = vadd.f32 %v354, %v427
        %v429 = vpop.f32.mrb[0].mxu0
        %430 = vdwg.mxu0
        %v431 = vld [vmem:[#allocation2 + $0x2] sm:$0xff]
        %v432 = vld [vmem:[#allocation2 + $0xa] sm:$0xff]
        %v433 = vpack.c.bf16 %v432, %v431
        %s434 = scalar_lea.vmem [#allocation6], 72
        %v435 = vld [vmem:[%s434] sm:$0xf]
        %v436 = vld [vmem:[%s434 + $0x4] sm:$0xf]
        %v437 = vld [vmem:[%s434 + $0x8] sm:$0xf]
        %v438 = vld [vmem:[%s434 + $0xc] sm:$0xf]
        %v439 = vld [vmem:[%s434 + $0x10] sm:$0xf]
        %v440 = vld [vmem:[%s434 + $0x14] sm:$0xf]
        %v441 = vld [vmem:[%s434 + $0x18] sm:$0xf]
        %v442 = vld [vmem:[%s434 + $0x1c] sm:$0xf]
        %v443 = vld [vmem:[%s434 + $0x20] sm:$0xf]
        %v453 = vunpack.c.l.b16 %v435
        %v454 = vunpack.c.l.b16 %v436
        %v455 = vunpack.c.l.b16 %v437
        %v456 = vunpack.c.l.b16 %v438
        %v457 = vunpack.c.l.b16 %v439
        %v458 = vunpack.c.l.b16 %v440
        %v459 = vunpack.c.l.b16 %v441
        %v460 = vunpack.c.l.b16 %v442
        %v461 = vunpack.c.l.b16 %v443
        %v462 = vpack.c.b16 %v454, %v453
        %v463 = vpack.c.b16 %v456, %v455
        %v464 = vpack.c.b16 %v458, %v457
        %v465 = vpack.c.b16 %v460, %v459
        %v466 = vpack.c.b16 %v461, %v461
        %v472 = vsel %vm308, %v433, 0
        %v475 = vsel %vm312, %v466, 0
        %477 = vmatprep.subr.bf16.mxu0 0
        %478 = vmatpush1.bf16.msra.mxu0 %v462
        %479 = vmatprep.subr.bf16.mxu0 0
        %480 = vmatpush1.bf16.msra.mxu0 %v463
        %481 = vmatprep.subr.bf16.mxu0 0
        %482 = vmatpush1.bf16.msra.mxu0 %v464
        %483 = vmatprep.subr.bf16.mxu0 0
        %484 = vmatpush1.bf16.msra.mxu0 %v465
        %485 = vmatprep.subr.bf16.mxu0 0
        %486 = vmatpush1.bf16.msra.mxu0 %v475
        %487 = vmatprep.subr.bf16.mxu0 0
        %488 = vmatpush1.bf16.msra.mxu0 0
        %489 = vmatprep.subr.bf16.mxu0 0
        %490 = vmatpush1.bf16.msra.mxu0 0
        %491 = vmatprep.subr.bf16.mxu0 0
        %492 = vmatpush1.bf16.msra.mxu0 0
        %493 = vmatprep.subr.bf16.mxu0 0
        %494 = vmatpush1.bf16.msra.mxu0 0
        %495 = vmatprep.subr.bf16.mxu0 0
        %496 = vmatpush1.bf16.msra.mxu0 0
        %497 = vmatprep.subr.bf16.mxu0 0
        %498 = vmatpush1.bf16.msra.mxu0 0
        %499 = vmatprep.subr.bf16.mxu0 0
        %500 = vmatpush1.bf16.msra.mxu0 0
        %501 = vmatprep.subr.bf16.mxu0 0
        %502 = vmatpush1.bf16.msra.mxu0 0
        %503 = vmatprep.subr.bf16.mxu0 0
        %504 = vmatpush1.bf16.msra.mxu0 0
        %505 = vmatprep.subr.bf16.mxu0 0
        %506 = vmatpush1.bf16.msra.mxu0 0
        %507 = vmatprep.subr.bf16.mxu0 0
        %508 = vmatpush1.bf16.msra.mxu0 0
        %509 = vmatprep.mubr.bf16.mxu0 0
        %510 = vmatmul.mubr.bf16.gmra.mrb[0].mxu0 %v472
        %v511 = vpop.f32.mrb[0].mxu0
        %v512 = vadd.f32 0.0, %v511
        %v513 = vpop.f32.mrb[0].mxu0
        %v514 = vpop.f32.mrb[0].mxu0
        %v515 = vadd.f32 0.0, %v514
        %v516 = vpop.f32.mrb[0].mxu0
        %517 = vdwg.mxu0
        %v518 = vadd.f32 %v425, %v512
        %v519 = vadd.f32 %v428, %v515
        %v520 = vld [vmem:[%s2] sm:$0x1]
        %v522 = vlaneseq
        %v523 = vshrl.u32 %v522, 7
        %v524 = vsub.s32 0, %v523
        %v525 = vrot.slane %v520, %v524
        %v527 = vmul.f32 %v518, %v525
        %v528 = vmul.f32 %v519, %v525
        %v529 = vld [vmem:[%s3] sm:$0x1]
        %v531 = vlaneseq
        %v532 = vshrl.u32 %v531, 7
        %v533 = vsub.s32 0, %v532
        %v534 = vrot.slane %v529, %v533
        %v536 = vadd.f32 %v527, %v534
        %v537 = vadd.f32 %v528, %v534
        %v538 = vmax.f32 %v536, 0.0
        %v539 = vmax.f32 %v537, 0.0
        %540 = vst [vmem:[%s230] sm:$0xff] %v538
        %541 = vst [vmem:[%s230 + $0x8] sm:$0xff] %v539
        %s542 = sand.u32 %s119, 1
        %s543 = scalar_lea.sflag [#allocation5], %s542
        %s544 = sand.u32 %s119, 1
        %s545 = smul.addr %s544, 16
        %s546 = scalar_lea.vmem [#allocation8], %s545
        // Predicated region
        $region45: #{tpu_custom_call.1} parent=35 // pred_check
          %p547 = pneg %p129
        $region46: #{tpu_custom_call.1} parent=35 // pred_check_branch
          %549 = sbr.rel (%p547) target = $region48
        $region47: #{tpu_custom_call.1} parent=35 // pred_region
          %s551 = ssub.s32 256, 256
          %552 = vsyncadd %s543, %s551
          %s553 = smul.addr %s22, 2
          %s554 = smul.addr %s553, 128
          %s555 = scalar_lea.hbm %s4, %s554
          %s556 = sshll.u32 %s546, 4
          %s557 = int_to_ptr.vmem [resolvable:$true] %s556
          %562 = dma.vmem_to_hbm [thread:$0]  %s557, 256, %s555, %s543, 128, 128, 8
        $region48: #{tpu_custom_call.1} parent=35 // pred_fallthru
          _
      $region36: #{tpu_custom_call.1} parent=5 // pred_fallthru
        _
      %p563 = scmp.le.s32.totalorder 2, %s17
      // Predicated region
      $region49: #{tpu_custom_call.1} parent=5 // pred_check
        %p564 = pneg %p563
      $region50: #{tpu_custom_call.1} parent=5 // pred_check_branch
        %566 = sbr.rel (%p564) target = $region52
      $region51: #{tpu_custom_call.1} parent=5 // pred_region
        %s567 = ssub.s32 %s17, 2
        // Predicated region
        $region53: #{tpu_custom_call.1} parent=51 // pred_check
          %p568 = pneg %p135
        $region54: #{tpu_custom_call.1} parent=51 // pred_check_branch
          %570 = sbr.rel (%p568) target = $region56
        $region55: #{tpu_custom_call.1} parent=51 // pred_region
          %s571 = sand.u32 %s120, 1
          %s572 = scalar_lea.sflag [#allocation5], %s571
          %s573 = sand.u32 %s120, 1
          %s574 = smul.addr %s573, 16
          %s575 = scalar_lea.vmem [#allocation8], %s574
          %576 = dma.done %s572, 256
        $region56: #{tpu_custom_call.1} parent=51 // pred_fallthru
          _
      $region52: #{tpu_custom_call.1} parent=5 // pred_fallthru
        _
    $region6: #{tpu_custom_call.1} parent=1 // loop_footer
      %s21 = sadd.s32 1, %s17
    $region7: #{tpu_custom_call.1} parent=1 // loop_footer_branch
      %16 = sbr.rel target = $region3
    $region8: #{tpu_custom_call.1} parent=1 // loop_exit
      _
    %577 = vsyncpa [#allocation4], 1
    %s578 = scalar_lea.sflag [#allocation4], 1
    %579 = vsyncpa %s578, 1
    %580 = vsyncpa [#allocation7], 1
    %581 = vsyncpa [#allocation5], 1
    %s582 = scalar_lea.sflag [#allocation5], 1
    %583 = vsyncpa %s582, 1

</llo_original>
